<compile_context>
chip_gen: v6e
topology: v6e:2x2x1
jax: 0.10.0
libtpu: 0.0.40
codegen_flags: <defaults>
</compile_context>

<pallas_src>
import functools
import math

import jax
import jax.numpy as jnp
from jax.experimental import pallas as pl
from jax.experimental.pallas import tpu as pltpu

_VMEM_LIMIT = 32 * 1024 * 1024  # safe on v5e/v6e (128 MiB) and v7x (64 MiB physical)


# ------------------------------------------------------------------ tiling helpers
def _pick_tile(dim, cap, align):
    """Largest tile <= cap that divides `dim` (preferring `align` multiples)."""
    if dim <= cap:
        return dim
    for t in range(cap - (cap % align), align - 1, -align):
        if t > 0 and dim % t == 0:
            return t
    for t in range(cap, 0, -1):
        if dim % t == 0:
            return t
    return dim


# ------------------------------------------------------------------ matmul kernel
def _matmul_bias_kernel(a_ref, b_ref, bias_ref, o_ref, acc_ref, *, activation):
    @pl.when(pl.program_id(2) == 0)
    def _():
        acc_ref[...] = jnp.zeros_like(acc_ref)

    acc_ref[...] += jnp.dot(a_ref[...], b_ref[...], preferred_element_type=jnp.float32)

    @pl.when(pl.program_id(2) == pl.num_programs(2) - 1)
    def _():
        out = acc_ref[...] + bias_ref[...]
        if activation == "tanh":
            out = jnp.tanh(out)
        elif activation == "relu":
            out = jnp.maximum(out, 0.0)
        o_ref[...] = out.astype(o_ref.dtype)


def pallas_matmul(a, b, bias=None, activation=None, out_dtype=jnp.bfloat16):
    """C = act(A @ B + bias).  A: (M,K), B: (K,N).  bf16 MXU inputs, f32 accumulate."""
    M, K = a.shape
    K2, N = b.shape
    assert K == K2
    if bias is None:
        bias = jnp.zeros((N,), jnp.float32)
    bias2d = jnp.asarray(bias, jnp.float32).reshape(1, N)

    tm = _pick_tile(M, 256, 8)
    tn = _pick_tile(N, 256, 128)
    tk = _pick_tile(K, 512, 128)
    grid = (M // tm, N // tn, K // tk)

    kernel = functools.partial(_matmul_bias_kernel, activation=activation)
    return pl.pallas_call(
        kernel,
        out_shape=jax.ShapeDtypeStruct((M, N), out_dtype),
        grid=grid,
        in_specs=[
            pl.BlockSpec((tm, tk), lambda i, j, k: (i, k)),
            pl.BlockSpec((tk, tn), lambda i, j, k: (k, j)),
            pl.BlockSpec((1, tn), lambda i, j, k: (0, j)),
        ],
        out_specs=pl.BlockSpec((tm, tn), lambda i, j, k: (i, j)),
        scratch_shapes=[pltpu.VMEM((tm, tn), jnp.float32)],
        compiler_params=pltpu.CompilerParams(
            dimension_semantics=("parallel", "parallel", "arbitrary"),
            vmem_limit_bytes=_VMEM_LIMIT,
        ),
    )(a.astype(jnp.bfloat16), b.astype(jnp.bfloat16), bias2d)


# --------------------------------------------------------------------- FFN kernel
def _ffn_kernel(x_ref, w1_ref, b1_ref, w2_ref, b2_ref, o_ref):
    h = jnp.dot(x_ref[...], w1_ref[...], preferred_element_type=jnp.float32) + b1_ref[...]
    h = jnp.maximum(h, 0.0).astype(w2_ref.dtype)  # ReLU, back to bf16 for second MXU pass
    o_ref[...] = (
        jnp.dot(h, w2_ref[...], preferred_element_type=jnp.float32) + b2_ref[...]
    ).astype(o_ref.dtype)


def pallas_ffn(x, w1, b1, w2, b2, out_dtype=jnp.bfloat16):
    """Fused position-wise FFN: relu(x @ W1 + b1) @ W2 + b2, tiled over rows."""
    M, H = x.shape
    Di = w1.shape[1]
    tm = _pick_tile(M, 256, 8)
    return pl.pallas_call(
        _ffn_kernel,
        out_shape=jax.ShapeDtypeStruct((M, H), out_dtype),
        grid=(M // tm,),
        in_specs=[
            pl.BlockSpec((tm, H), lambda i: (i, 0)),
            pl.BlockSpec((H, Di), lambda i: (0, 0)),
            pl.BlockSpec((1, Di), lambda i: (0, 0)),
            pl.BlockSpec((Di, H), lambda i: (0, 0)),
            pl.BlockSpec((1, H), lambda i: (0, 0)),
        ],
        out_specs=pl.BlockSpec((tm, H), lambda i: (i, 0)),
        compiler_params=pltpu.CompilerParams(
            dimension_semantics=("parallel",),
            vmem_limit_bytes=_VMEM_LIMIT,
        ),
    )(
        x.astype(jnp.bfloat16),
        w1.astype(jnp.bfloat16),
        jnp.asarray(b1, jnp.float32).reshape(1, Di),
        w2.astype(jnp.bfloat16),
        jnp.asarray(b2, jnp.float32).reshape(1, H),
    )


# --------------------------------------------------------------- attention kernel
def _attn_kernel(q_ref, k_ref, v_ref, o_ref, *, scale, hp, dv):
    q = q_ref[0]  # (hp, Lq, dk) bf16
    k = k_ref[0]  # (hp, Lk, dk) bf16
    v = v_ref[0]  # (hp, Lk, dv) bf16
    # scores + softmax in f32 (VPU/EUP path), matmuls in bf16 with f32 accumulation
    s = jnp.einsum("hqd,hkd->hqk", q, k, preferred_element_type=jnp.float32) * scale
    s = s - jnp.max(s, axis=-1, keepdims=True)
    p = jnp.exp(s)
    inv = pl.reciprocal(jnp.sum(p, axis=-1, keepdims=True), approx=True)
    p = (p * inv).astype(v.dtype)
    out = jnp.einsum("hqk,hkd->hqd", p, v, preferred_element_type=jnp.float32)  # (hp,Lq,dv)
    lq = q.shape[1]
    # pack the hp heads into one lane-dense (Lq, hp*dv) tile (hp*dv == 128)
    o_ref[0] = jnp.transpose(out, (1, 0, 2)).reshape(lq, hp * dv).astype(o_ref.dtype)


def pallas_attention(q, k, v):
    """q: (B, nh, Lq, dk), k: (B, nh, Lk, dk), v: (B, nh, Lk, dv) -> (B, Lq, nh*dv)."""
    B, nh, Lq, dk = q.shape
    Lk = k.shape[2]
    dv = v.shape[3]
    hp = max(1, 128 // dv)          # heads per grid step -> 128-lane output tile
    if hp > nh or nh % hp != 0:
        hp = 1
    kernel = functools.partial(_attn_kernel, scale=1.0 / math.sqrt(dk), hp=hp, dv=dv)
    return pl.pallas_call(
        kernel,
        out_shape=jax.ShapeDtypeStruct((B, Lq, nh * dv), jnp.bfloat16),
        grid=(B, nh // hp),
        in_specs=[
            pl.BlockSpec((1, hp, Lq, dk), lambda b, g: (b, g, 0, 0)),
            pl.BlockSpec((1, hp, Lk, dk), lambda b, g: (b, g, 0, 0)),
            pl.BlockSpec((1, hp, Lk, dv), lambda b, g: (b, g, 0, 0)),
        ],
        out_specs=pl.BlockSpec((1, Lq, hp * dv), lambda b, g: (b, 0, g)),
        compiler_params=pltpu.CompilerParams(
            dimension_semantics=("parallel", "parallel"),
            vmem_limit_bytes=_VMEM_LIMIT,
        ),
    )(q.astype(jnp.bfloat16), k.astype(jnp.bfloat16), v.astype(jnp.bfloat16))


# -------------------------------------------------------------------------- glue
def layer_norm(x, gamma, beta, eps=1e-5):
    x = x.astype(jnp.float32)
    mu = x.mean(-1, keepdims=True)
    var = ((x - mu) ** 2).mean(-1, keepdims=True)
    return (x - mu) / jnp.sqrt(var + eps) * gamma + beta


def init_params(key, *, embed_size, vocab_size, hidden_size, n_concepts,
                n_head=8, d_k=64, d_v=64, d_inner=2048, img_patch_feat=64):
    H = hidden_size
    names_shapes = {
        "E_word": (vocab_size, embed_size),
        "E_concept": (n_concepts, embed_size),
        "E_dec": (vocab_size, embed_size),
        "W_img": (img_patch_feat, H), "b_img": (H,),
        "W_txt": (embed_size, H), "b_txt": (H,),
        "W_con": (embed_size, H), "b_con": (H,),
        "W_q": (H, n_head * d_k),
        "W_kv": (H, n_head * d_k + n_head * d_v),   # fused [W_k | W_v]
        "W_o": (n_head * d_v, H), "b_o": (H,),
        "W_ff1": (H, d_inner), "b_ff1": (d_inner,),
        "W_ff2": (d_inner, H), "b_ff2": (H,),
        "W_e2h": (embed_size, H), "b_h": (H,),
        "W_c2h": (H, H),
        "W_vocab": (H, vocab_size), "b_vocab": (vocab_size,),
    }
    params = {}
    keys = jax.random.split(key, len(names_shapes))
    for k, (name, shape) in zip(keys, names_shapes.items()):
        params[name] = (0.02 * jax.random.normal(k, shape)).astype(jnp.float32)
    params["ln1_g"] = jnp.ones((H,), jnp.float32)
    params["ln1_b"] = jnp.zeros((H,), jnp.float32)
    params["ln2_g"] = jnp.ones((H,), jnp.float32)
    params["ln2_b"] = jnp.zeros((H,), jnp.float32)
    return params


def aimnet(params, V, T, *, n_head=8, d_k=64, d_v=64):
    """Multi-head cross attention (V attends to T) + FFN, all heavy math in Pallas."""
    B, Lq, H = V.shape
    Lk = T.shape[1]
    nk = n_head * d_k

    # fused K|V projection of T (single pass over the activations), separate Q from V
    kv = pallas_matmul(T.reshape(B * Lk, H), params["W_kv"])                      # (B*Lk, 2*nh*dk)
    k = kv[:, :nk].reshape(B, Lk, n_head, d_k).transpose(0, 2, 1, 3)              # (B, nh, Lk, dk)
    v = kv[:, nk:].reshape(B, Lk, n_head, d_v).transpose(0, 2, 1, 3)              # (B, nh, Lk, dv)
    q = pallas_matmul(V.reshape(B * Lq, H), params["W_q"]) \
        .reshape(B, Lq, n_head, d_k).transpose(0, 2, 1, 3)                        # (B, nh, Lq, dk)

    attn_out = pallas_attention(q, k, v)                                          # (B, Lq, nh*dv)
    out = pallas_matmul(attn_out.reshape(B * Lq, n_head * d_v),
                        params["W_o"], params["b_o"]).reshape(B, Lq, H)

    x = layer_norm(out.astype(jnp.float32) + V.astype(jnp.float32),
                   params["ln1_g"], params["ln1_b"])
    ffn_out = pallas_ffn(x.reshape(B * Lq, H),
                         params["W_ff1"], params["b_ff1"],
                         params["W_ff2"], params["b_ff2"]).reshape(B, Lq, H)
    sgir = layer_norm(ffn_out.astype(jnp.float32) + x, params["ln2_g"], params["ln2_b"])
    return sgir  # attention probabilities are not materialized (caller discards them)


def total_model_forward(params, images, captions, image_concepts, lengths, basic_model):
    """Mirrors total_Model.forward: Encoder2VT -> aimNET -> Decoder -> pack_padded_sequence."""
    B, C, Hi, Wi = images.shape
    H = params["W_img"].shape[1]
    vocab = params["W_vocab"].shape[1]
    ph = pw = 4

    # ---- Encoder2VT: visual regions V and textual features T
    patches = images.reshape(B, C, Hi // ph, ph, Wi // pw, pw)
    patches = patches.transpose(0, 2, 4, 1, 3, 5).reshape(B, (Hi // ph) * (Wi // pw), C * ph * pw)
    Nv = patches.shape[1]
    V = pallas_matmul(patches.reshape(B * Nv, -1), params["W_img"], params["b_img"],
                      activation="tanh").reshape(B, Nv, H)            # tanh fused in-kernel

    L = captions.shape[1]
    cap_emb = params["E_word"][captions]                              # (B, L, E)
    T = pallas_matmul(cap_emb.reshape(B * L, -1), params["W_txt"], params["b_txt"]) \
        .reshape(B, L, H)
    con_emb = params["E_concept"][image_concepts].mean(axis=1)        # (B, E)
    Tc = pallas_matmul(con_emb, params["W_con"], params["b_con"])     # (B, H)
    T = jnp.tanh(T.astype(jnp.float32) + Tc.astype(jnp.float32)[:, None, :])
    # TODO(synk): padded caption positions beyond `lengths` are not masked out of the
    # cross-attention (original Encoder2VT/aimNET source is unavailable to confirm masking).

    # ---- aimNET (iteration_times = 1)
    SGIR = aimnet(params, V, T)

    # ---- Decoder(SGIR, SGIR, captions, basic_model)
    # TODO(synk): `basic_model` only selects the CNN backbone name in the original code; unused here.
    emb = params["E_dec"][captions]                                   # (B, L, E)
    ctx = SGIR.mean(axis=1)                                           # (B, H)
    h1 = pallas_matmul(emb.reshape(B * L, -1), params["W_e2h"], params["b_h"]).reshape(B, L, H)
    h2 = pallas_matmul(ctx, params["W_c2h"])                          # (B, H)
    h = jnp.tanh(h1.astype(jnp.float32) + h2.astype(jnp.float32)[:, None, :])
    scores = pallas_matmul(h.reshape(B * L, H), params["W_vocab"], params["b_vocab"],
                           out_dtype=jnp.float32).reshape(B, L, vocab)
    return scores


def pack_padded_sequence_batch_first(scores, lengths):
    """PyTorch pack_padded_sequence(batch_first=True) semantics; lengths sorted descending."""
    lengths = [int(l) for l in lengths]
    max_len = lengths[0]
    data_rows, batch_sizes = [], []
    for t in range(max_len):
        bs = sum(1 for l in lengths if l > t)
        batch_sizes.append(bs)
        data_rows.append(scores[:bs, t, :])
    return jnp.concatenate(data_rows, axis=0), jnp.asarray(batch_sizes, jnp.int32)


# -------------------------------------------------------------------------------- main
if __name__ == "__main__":
    embed_size, vocab_size, hidden_size = 32, 64, 32
    B, C, Hi, Wi = 2, 4, 16, 16
    seq_len, n_concepts, n_concept_per_img = 8, 32, 5

    key = jax.random.PRNGKey(0)
    k_param, k_img, k_cap, k_con = jax.random.split(key, 4)

    params = init_params(k_param, embed_size=embed_size, vocab_size=vocab_size,
                         hidden_size=hidden_size, n_concepts=n_concepts,
                         img_patch_feat=C * 4 * 4)

    images = jax.random.normal(k_img, (B, C, Hi, Wi), jnp.float32)
    captions = jax.random.randint(k_cap, (B, seq_len), 0, vocab_size, jnp.int32)
    image_concepts = jax.random.randint(k_con, (B, n_concept_per_img), 0, n_concepts, jnp.int32)
    lengths = [8, 6]  # sorted descending, as required by pack_padded_sequence
    basic_model = "resnet152"

    scores = total_model_forward(params, images, captions, image_concepts, lengths, basic_model)
    packed_data, batch_sizes = pack_padded_sequence_batch_first(scores, lengths)

    jax.block_until_ready(packed_data)
    assert scores.shape == (B, seq_len, vocab_size), scores.shape
    assert packed_data.shape == (sum(lengths), vocab_size), packed_data.shape
    assert bool(jnp.all(jnp.isfinite(packed_data)))
    print("KERNEL_OK")
</pallas_src>

<mosaic_0001>
module attributes {stable_mosaic.version = 11 : i64} {
  func.func @_matmul_bias_kernel(%arg0: i32, %arg1: i32, %arg2: i32, %arg3: memref<32x64xbf16, #tpu.memory_space<vmem>>, %arg4: memref<64x32xbf16, #tpu.memory_space<vmem>>, %arg5: memref<1x32xf32, #tpu.memory_space<vmem>>, %arg6: memref<32x32xbf16, #tpu.memory_space<vmem>>, %arg7: memref<32x32xf32, #tpu.memory_space<vmem>>) attributes {dimension_semantics = [#tpu.dimension_semantics<parallel>, #tpu.dimension_semantics<parallel>, #tpu.dimension_semantics<arbitrary>], iteration_bounds = array<i64: 1, 1, 1>, scalar_prefetch = 0 : i64, scratch_operands = 1 : i64, tpu.core_type = #tpu.core_type<tc>, window_params = [{transform_indices = @transform_0, window_bounds = array<i64: 32, 64>}, {transform_indices = @transform_1, window_bounds = array<i64: 64, 32>}, {transform_indices = @transform_2, window_bounds = array<i64: 1, 32>}, {transform_indices = @transform_3, window_bounds = array<i64: 32, 32>}]} {
    %c0_i32 = arith.constant 0 : i32
    %0 = arith.cmpi eq, %arg2, %c0_i32 : i32
    %1 = arith.extui %0 : i1 to i32
    %c0_i32_0 = arith.constant 0 : i32
    %2 = arith.cmpi ne, %1, %c0_i32_0 : i32
    scf.if %2 {
      %cst_10 = arith.constant 0.000000e+00 : f32
      %12 = vector.broadcast %cst_10 : f32 to vector<32x32xf32>
      %c0_11 = arith.constant 0 : index
      %c0_12 = arith.constant 0 : index
      %13 = vector.load %arg7[%c0_11, %c0_12] : memref<32x32xf32, #tpu.memory_space<vmem>>, vector<32x32xf32>
      tpu.vector_store %arg7[%c0_11, %c0_12], %12 {strides = array<i32>} : memref<32x32xf32, #tpu.memory_space<vmem>>, vector<32x32xf32>,
    } else {
    }
    %c0 = arith.constant 0 : index
    %c0_1 = arith.constant 0 : index
    %3 = vector.load %arg7[%c0, %c0_1] : memref<32x32xf32, #tpu.memory_space<vmem>>, vector<32x32xf32>
    %c0_2 = arith.constant 0 : index
    %c0_3 = arith.constant 0 : index
    %4 = vector.load %arg3[%c0_2, %c0_3] : memref<32x64xbf16, #tpu.memory_space<vmem>>, vector<32x64xbf16>
    %c0_4 = arith.constant 0 : index
    %c0_5 = arith.constant 0 : index
    %5 = vector.load %arg4[%c0_4, %c0_5] : memref<64x32xbf16, #tpu.memory_space<vmem>>, vector<64x32xbf16>
    %cst = arith.constant dense<0.000000e+00> : vector<32x32xf32>
    %6 = tpu.matmul %4, %5, %cst {dimension_numbers = #tpu.dot_dimension_numbers<[1], [0], [0], [1], [0, 0, 1, 1], [], []>} : vector<32x64xbf16>, vector<64x32xbf16>, vector<32x32xf32> -> vector<32x32xf32>
    %7 = arith.addf %3, %6 : vector<32x32xf32>
    %c0_6 = arith.constant 0 : index
    %c0_7 = arith.constant 0 : index
    %8 = vector.load %arg7[%c0_6, %c0_7] : memref<32x32xf32, #tpu.memory_space<vmem>>, vector<32x32xf32>
    tpu.vector_store %arg7[%c0_6, %c0_7], %7 {strides = array<i32>} : memref<32x32xf32, #tpu.memory_space<vmem>>, vector<32x32xf32>,
    %c0_i32_8 = arith.constant 0 : i32
    %9 = arith.cmpi eq, %arg2, %c0_i32_8 : i32
    %10 = arith.extui %9 : i1 to i32
    %c0_i32_9 = arith.constant 0 : i32
    %11 = arith.cmpi ne, %10, %c0_i32_9 : i32
    scf.if %11 {
      %c0_10 = arith.constant 0 : index
      %c0_11 = arith.constant 0 : index
      %12 = vector.load %arg7[%c0_10, %c0_11] : memref<32x32xf32, #tpu.memory_space<vmem>>, vector<32x32xf32>
      %c0_12 = arith.constant 0 : index
      %c0_13 = arith.constant 0 : index
      %13 = vector.load %arg5[%c0_12, %c0_13] : memref<1x32xf32, #tpu.memory_space<vmem>>, vector<1x32xf32>
      %14 = vector.broadcast %13 : vector<1x32xf32> to vector<32x32xf32>
      %15 = arith.addf %12, %14 : vector<32x32xf32>
      %16 = math.tanh %15 : vector<32x32xf32>
      %17 = arith.truncf %16 : vector<32x32xf32> to vector<32x32xbf16>
      %c0_14 = arith.constant 0 : index
      %c0_15 = arith.constant 0 : index
      %18 = vector.load %arg6[%c0_14, %c0_15] : memref<32x32xbf16, #tpu.memory_space<vmem>>, vector<32x32xbf16>
      tpu.vector_store %arg6[%c0_14, %c0_15], %17 {strides = array<i32>} : memref<32x32xbf16, #tpu.memory_space<vmem>>, vector<32x32xbf16>,
    } else {
    }
    return
  }
  func.func @transform_0(%arg0: i32, %arg1: i32, %arg2: i32) -> (i32, i32) {
    %c0_i32 = arith.constant 0 : i32
    return %arg0, %arg2 : i32, i32
  }
  func.func @transform_1(%arg0: i32, %arg1: i32, %arg2: i32) -> (i32, i32) {
    %c0_i32 = arith.constant 0 : i32
    return %arg2, %arg1 : i32, i32
  }
  func.func @transform_2(%arg0: i32, %arg1: i32, %arg2: i32) -> (i32, i32) {
    %c0_i32 = arith.constant 0 : i32
    %c0_i32_0 = arith.constant 0 : i32
    return %c0_i32, %arg1 : i32, i32
  }
  func.func @transform_3(%arg0: i32, %arg1: i32, %arg2: i32) -> (i32, i32) {
    %c0_i32 = arith.constant 0 : i32
    return %arg0, %arg1 : i32, i32
  }
}

</mosaic_0001>

<llo_original>
// kernel: tpu_custom_call.1
$region0: #{tpu_custom_call.1}
  #allocation0 [shape = 'u32[]', space=smem, size = 0x4, offset = 0x4, fixed_abs, tag = 'smem constant byte address 0x4 - core index']
  #allocation1 [shape = 'u32[144,128]{1,0:T(1,128)}', space=vmem, size = 0x12000, scoped, tag = 'internal scratch']
  #allocation2 [shape = 'f32[32,32]{1,0:T(8,128)}', space=vmem, size = 0x4000, scoped, tag = 'scratch operand']
  %s0 = inlined_call_operand.vmem [shape: bf16[32,64], index: 0, kind: input, shape index: {}]
  %s1 = inlined_call_operand.vmem [shape: bf16[64,32], index: 1, kind: input, shape index: {}]
  %s2 = inlined_call_operand.vmem [shape: f32[1,32], index: 2, kind: input, shape index: {}]
  %s3 = inlined_call_operand.hbm [shape: bf16[32,32], index: 3, kind: output, shape index: {}]
  %s4 = sld [smem:[#allocation0]]
  $region30: #{tpu_custom_call.1} parent=0
    _
  %s6 = ssub.s32 1, %s4
  %s7 = scalar_select 0, %s6, %s4
  $region1: #{tpu_custom_call.1} parent=0
    #allocation3 [shape = 'u8[8192]{0}', space=vmem, size = 0x2000, scoped, tag = 'output window, operand 0, single buffered']
    #allocation4 [shape = 's32[1]{0}', space=sflag, size = 0x4, scoped, tag = 'scoped memory for tpu_custom_call.1']
    %8 = vsyncpa [#allocation4], 0
    // Predicated region
    $region2: #{tpu_custom_call.1} parent=1 // pred_check
      _
    $region3: #{tpu_custom_call.1} parent=1 // pred_check_branch
      %10 = sbr.rel (0) target = $region5
    $region4: #{tpu_custom_call.1} parent=1 // pred_region
      _
    $region5: #{tpu_custom_call.1} parent=1 // pred_fallthru
      _
    // Predicated region
    $region6: #{tpu_custom_call.1} parent=1 // pred_check
      _
    $region7: #{tpu_custom_call.1} parent=1 // pred_check_branch
      %12 = sbr.rel (0) target = $region9
    $region8: #{tpu_custom_call.1} parent=1 // pred_region
      _
    $region9: #{tpu_custom_call.1} parent=1 // pred_fallthru
      _
    // Predicated region
    $region10: #{tpu_custom_call.1} parent=1 // pred_check
      _
    $region11: #{tpu_custom_call.1} parent=1 // pred_check_branch
      %14 = sbr.rel (0) target = $region13
    $region12: #{tpu_custom_call.1} parent=1 // pred_region
      _
    $region13: #{tpu_custom_call.1} parent=1 // pred_fallthru
      _
    %p16 = scmp.eq.s32.totalorder 0, 0
    // Predicated region
    $region14: #{tpu_custom_call.1} parent=1 // pred_check
      %p17 = pneg %p16
    $region15: #{tpu_custom_call.1} parent=1 // pred_check_branch
      %19 = sbr.rel (%p17) target = $region17
    $region16: #{tpu_custom_call.1} parent=1 // pred_region
      %vm20 = vcmask 261120
      %21 = vst.msk [vmem:[#allocation2] sm:$0xff] %vm20, 0.0
      %22 = vst.msk [vmem:[#allocation2 + $0x8] sm:$0xff] %vm20, 0.0
      %23 = vst.msk [vmem:[#allocation2 + $0x10] sm:$0xff] %vm20, 0.0
      %24 = vst.msk [vmem:[#allocation2 + $0x18] sm:$0xff] %vm20, 0.0
    $region17: #{tpu_custom_call.1} parent=1 // pred_fallthru
      _
    %v25 = vld [vmem:[#allocation2] sm:$0xff]
    %v26 = vld [vmem:[#allocation2 + $0x8] sm:$0xff]
    %v27 = vld [vmem:[#allocation2 + $0x10] sm:$0xff]
    %v28 = vld [vmem:[#allocation2 + $0x18] sm:$0xff]
    %v29 = vld [vmem:[%s0] sm:$0xf]
    %v30 = vld [vmem:[%s0 + $0x4] sm:$0xf]
    %v31 = vld [vmem:[%s0 + $0x8] sm:$0xf]
    %v32 = vld [vmem:[%s0 + $0xc] sm:$0xf]
    %v33 = vld [vmem:[%s1] sm:$0xf]
    %v34 = vld [vmem:[%s1 + $0x4] sm:$0xf]
    %v35 = vld [vmem:[%s1 + $0x8] sm:$0xf]
    %v36 = vld [vmem:[%s1 + $0xc] sm:$0xf]
    %v37 = vld [vmem:[%s1 + $0x10] sm:$0xf]
    %v38 = vld [vmem:[%s1 + $0x14] sm:$0xf]
    %v39 = vld [vmem:[%s1 + $0x18] sm:$0xf]
    %v40 = vld [vmem:[%s1 + $0x1c] sm:$0xf]
    %v45 = vunpack.c.l.b16 %v29
    %v46 = vunpack.c.l.b16 %v30
    %v47 = vunpack.c.l.b16 %v31
    %v48 = vunpack.c.l.b16 %v32
    %v49 = vpack.c.b16 %v46, %v45
    %v50 = vpack.c.b16 %v48, %v47
    %v59 = vunpack.c.l.b16 %v33
    %v60 = vunpack.c.l.b16 %v34
    %v61 = vunpack.c.l.b16 %v35
    %v62 = vunpack.c.l.b16 %v36
    %v63 = vunpack.c.l.b16 %v37
    %v64 = vunpack.c.l.b16 %v38
    %v65 = vunpack.c.l.b16 %v39
    %v66 = vunpack.c.l.b16 %v40
    %v67 = vpack.c.b16 %v60, %v59
    %v68 = vpack.c.b16 %v62, %v61
    %v69 = vpack.c.b16 %v64, %v63
    %v70 = vpack.c.b16 %v66, %v65
    %vm75 = vcmask 523264
    %v77 = vsel %vm75, %v49, 0
    %v80 = vsel %vm75, %v50, 0
    %82 = vmatprep.subr.bf16.mxu0 0
    %83 = vmatpush1.bf16.msra.mxu0 0
    %84 = vmatprep.subr.bf16.mxu0 0
    %85 = vmatpush1.bf16.msra.mxu0 0
    %86 = vmatprep.subr.bf16.mxu0 0
    %87 = vmatpush1.bf16.msra.mxu0 0
    %88 = vmatprep.subr.bf16.mxu0 0
    %89 = vmatpush1.bf16.msra.mxu0 0
    %90 = vmatprep.subr.bf16.mxu0 0
    %91 = vmatpush1.bf16.msra.mxu0 %v70
    %92 = vmatprep.subr.bf16.mxu0 0
    %93 = vmatpush1.bf16.msra.mxu0 %v69
    %94 = vmatprep.subr.bf16.mxu0 0
    %95 = vmatpush1.bf16.msra.mxu0 %v68
    %96 = vmatprep.subr.bf16.mxu0 0
    %97 = vmatpush1.bf16.msra.mxu0 %v67
    %98 = vmatprep.subr.bf16.mxu0 0
    %99 = vmatpush2.bf16.msra.mxu0 0
    %100 = vmatprep.subr.bf16.mxu0 0
    %101 = vmatpush2.bf16.msra.mxu0 0
    %102 = vmatprep.subr.bf16.mxu0 0
    %103 = vmatpush2.bf16.msra.mxu0 0
    %104 = vmatprep.subr.bf16.mxu0 0
    %105 = vmatpush2.bf16.msra.mxu0 0
    %106 = vmatprep.subr.bf16.mxu0 0
    %107 = vmatpush2.bf16.msra.mxu0 0
    %108 = vmatprep.subr.bf16.mxu0 0
    %109 = vmatpush2.bf16.msra.mxu0 0
    %110 = vmatprep.subr.bf16.mxu0 0
    %111 = vmatpush2.bf16.msra.mxu0 0
    %112 = vmatprep.subr.bf16.mxu0 0
    %113 = vmatpush2.bf16.msra.mxu0 0
    %114 = vmatprep.mubr.bf16.mxu0 0
    %115 = vmatmul.mubr.bf16.gmra.mxu0 %v77
    %v116 = vpop.f32.mrf.mxu0
    %v117 = vadd.f32 0.0, %v116
    %v118 = vpop.f32.mrf.mxu0
    %v119 = vpop.f32.mrf.mxu0
    %v120 = vadd.f32 0.0, %v119
    %v121 = vpop.f32.mrf.mxu0
    %122 = vmatprep.mubr.bf16.mxu0 0
    %123 = vmatmul.mubr.bf16.gmra.mxu0 %v80
    %v124 = vpop.f32.mrf.mxu0
    %v125 = vadd.f32 0.0, %v124
    %v126 = vpop.f32.mrf.mxu0
    %v127 = vpop.f32.mrf.mxu0
    %v128 = vadd.f32 0.0, %v127
    %v129 = vpop.f32.mrf.mxu0
    %130 = vdwg.mxu0
    %v131 = vadd.f32 %v25, %v117
    %v132 = vadd.f32 %v26, %v120
    %v133 = vadd.f32 %v27, %v125
    %v134 = vadd.f32 %v28, %v128
    %vm135 = vcmask 261120
    %136 = vst.msk [vmem:[#allocation2] sm:$0xff] %vm135, %v131
    %137 = vst.msk [vmem:[#allocation2 + $0x8] sm:$0xff] %vm135, %v132
    %138 = vst.msk [vmem:[#allocation2 + $0x10] sm:$0xff] %vm135, %v133
    %139 = vst.msk [vmem:[#allocation2 + $0x18] sm:$0xff] %vm135, %v134
    // Predicated region
    $region18: #{tpu_custom_call.1} parent=1 // pred_check
      %p140 = pneg %p16
    $region19: #{tpu_custom_call.1} parent=1 // pred_check_branch
      %142 = sbr.rel (%p140) target = $region21
    $region20: #{tpu_custom_call.1} parent=1 // pred_region
      %v143 = vld [vmem:[#allocation2] sm:$0xff]
      %v144 = vld [vmem:[#allocation2 + $0x8] sm:$0xff]
      %v145 = vld [vmem:[#allocation2 + $0x10] sm:$0xff]
      %v146 = vld [vmem:[#allocation2 + $0x18] sm:$0xff]
      %v147 = vld [vmem:[%s2] sm:$0x1]
      %v149 = vlaneseq
      %v150 = vshrl.u32 %v149, 7
      %v151 = vsub.s32 0, %v150
      %v152 = vrot.slane %v147, %v151
      %v154 = vadd.f32 %v143, %v152
      %v155 = vadd.f32 %v144, %v152
      %v156 = vadd.f32 %v145, %v152
      %v157 = vadd.f32 %v146, %v152
      %v158 = vtanh.pop %v154
      %v159 = vtanh.pop %v155
      %v160 = vtanh.pop %v156
      %v161 = vtanh.pop %v157
      %v162 = vpack.c.bf16 %v159, %v158
      %v163 = vpack.c.bf16 %v161, %v160
      %v166 = vunpack.c.l.b16 %v162
      %v167 = vunpack.c.h.b16 %v162
      %v168 = vunpack.c.l.b16 %v163
      %v169 = vunpack.c.h.b16 %v163
      %v170 = vpack.c.b16 %v166, %v166
      %v171 = vpack.c.b16 %v167, %v167
      %v172 = vpack.c.b16 %v168, %v168
      %v173 = vpack.c.b16 %v169, %v169
      %vm178 = vcmask 257024
      %179 = vst.msk [vmem:[#allocation3] sm:$0xf] %vm178, %v170
      %180 = vst.msk [vmem:[#allocation3 + $0x4] sm:$0xf] %vm178, %v171
      %181 = vst.msk [vmem:[#allocation3 + $0x8] sm:$0xf] %vm178, %v172
      %182 = vst.msk [vmem:[#allocation3 + $0xc] sm:$0xf] %vm178, %v173
    $region21: #{tpu_custom_call.1} parent=1 // pred_fallthru
      _
    // Predicated region
    $region22: #{tpu_custom_call.1} parent=1 // pred_check
      _
    $region23: #{tpu_custom_call.1} parent=1 // pred_check_branch
      %184 = sbr.rel (0) target = $region25
    $region24: #{tpu_custom_call.1} parent=1 // pred_region
      %s186 = ssub.s32 256, 256
      %187 = vsyncadd [#allocation4], %s186
      %s188 = sshll.u32 [#allocation3], 4
      %s189 = int_to_ptr.vmem [resolvable:$true] %s188
      %194 = dma.vmem_to_hbm [thread:$0]  %s189, 256, %s3, [#allocation4], 64, 64, 4
    $region25: #{tpu_custom_call.1} parent=1 // pred_fallthru
      _
    // Predicated region
    $region26: #{tpu_custom_call.1} parent=1 // pred_check
      _
    $region27: #{tpu_custom_call.1} parent=1 // pred_check_branch
      %196 = sbr.rel (0) target = $region29
    $region28: #{tpu_custom_call.1} parent=1 // pred_region
      %197 = dma.done [#allocation4], 256
    $region29: #{tpu_custom_call.1} parent=1 // pred_fallthru
      _
    %198 = vsyncpa [#allocation4], 1

</llo_original>
